<compile_context>
chip_gen: v5e
topology: v5e:2x2
jax: 0.10.0
libtpu: 0.0.40
codegen_flags: <defaults>
</compile_context>

<pallas_src>
import functools

import jax
import jax.numpy as jnp
from jax.experimental import pallas as pl
from jax.experimental.pallas import tpu as pltpu


def lstm_kernel(x_ref, wih_ref, b_ref, wbig_ref, wlin_ref, blin_ref, out_ref):
    seq_len, input_size = x_ref.shape
    four_h = wbig_ref.shape[0]
    H = four_h // 4
    pack = out_ref.shape[1]

    b = b_ref[...]          # (1, 4H)  permuted [o|f|g|i], sigma columns pre-scaled by 1/2
    wbig = wbig_ref[...]    # (4H, 4H) W_hh^T in rows [H, 2H), zeros elsewhere

    # ---- Input projection hoisted out of the recurrence. ----
    # input_size == 1 -> rank-1 product: pure VPU broadcast multiply; no MXU
    # fill/drain on the prologue critical path (review item 1).
    if input_size == 1:
        gates_x = x_ref[...] * wih_ref[...] + b                      # (seq, 4H)
    else:
        gates_x = jnp.dot(x_ref[...], wih_ref[...],
                          preferred_element_type=jnp.float32) + b    # (seq, 4H)

    # Lane mask selecting the g-gate quarter (tanh), lanes [2H, 3H).
    lane = jax.lax.broadcasted_iota(jnp.int32, (1, four_h), 1)
    g_mask = (lane >= 2 * H) & (lane < 3 * H)

    # Wide-lane state: h and c live in lanes [H, 2H) (quarter Q1).  The other
    # lanes carry bounded don't-care values; they are multiplied by zero rows
    # of wbig / wlin_big, so the recurrence stays exact.
    h_vec = jnp.zeros((1, four_h), jnp.float32)
    c_vec = jnp.zeros((1, four_h), jnp.float32)

    # Fully unrolled recurrence (seq_len is a static Python int).
    for t in range(seq_len):
        if t == 0:
            gates = gates_x[0:1, :]               # h_0 == 0: skip dead matmul
        else:
            gates = gates_x[t:t + 1, :] + jnp.dot(
                h_vec, wbig, preferred_element_type=jnp.float32)     # (1, 4H)

        # One EUP push for all four gates: sigma(x) = 0.5*tanh(x/2) + 0.5 with
        # the 1/2 folded into the sigma-gate weight columns at prep time.
        t1 = jnp.tanh(gates)
        act = jnp.where(g_mask, t1, 0.5 * t1 + 0.5)   # quarters = [o | f | g | i]

        # Two static lane rolls per step (XLU); multiplies are full-lane VPU.
        r1 = jnp.roll(act, H, axis=1)                 # quarters = [i | o | f | g]
        prod = act * r1                               # Q3 = i*g
        ig = jnp.roll(prod, 2 * H, axis=1)            # Q1 = i*g
        if t == 0:
            c_vec = ig                                # c_0 == 0 -> f*c term elided
        else:
            c_vec = ig + act * c_vec                  # Q1 = i*g + f*c
        tc = jnp.tanh(c_vec)
        h_vec = r1 * tc                               # Q1 = o*tanh(c)

    # predictions[-1] == Linear(last hidden state).  wlin_big carries W_lin^T
    # in rows [H, 2H) (zeros elsewhere), so the wide h vector is used directly.
    pred_row = jnp.dot(h_vec, wlin_ref[...],
                       preferred_element_type=jnp.float32) + blin_ref[...]  # (1, pack)

    def pad(row):
        if row.shape[1] == pack:
            return row
        return jnp.concatenate(
            [row, jnp.zeros((1, pack - row.shape[1]), jnp.float32)], axis=1)

    # Single lane-dense (3, pack) store: one unmasked writeback DMA.
    out_ref[...] = jnp.concatenate([pred_row, pad(h_vec), pad(c_vec)], axis=0)


def _round_up(v, m):
    return ((v + m - 1) // m) * m


# torch gate chunk order is [i, f, g, o]; kernel quarter order is [o, f, g, i].
_CHUNK_ORDER = (3, 1, 2, 0)
# sigma-gates (o, f, i) pre-scaled by 1/2 for the tanh-identity sigmoid.
_CHUNK_SCALE = (0.5, 0.5, 1.0, 0.5)


def _permute_scale_cols(w_t, H):
    """w_t: (K, 4H) with torch column order [i|f|g|o] -> [o|f|g|i], scaled."""
    chunks = [w_t[:, k * H:(k + 1) * H] * s
              for k, s in zip(_CHUNK_ORDER, _CHUNK_SCALE)]
    return jnp.concatenate(chunks, axis=1)


def prepare_lstm_params(w_ih, w_hh, b_ih, b_hh, w_lin, b_lin):
    """One-time parameter prep (transposes, gate permutation, sigma pre-scale,
    bias pre-sum, zero-row padding) — kept off the per-call path."""
    four_h = w_ih.shape[0]
    H = four_h // 4
    O = w_lin.shape[0]
    pack = max(128, _round_up(max(four_h, O), 128))

    wih_ps = _permute_scale_cols(jnp.asarray(w_ih, jnp.float32).T, H)   # (I, 4H)
    whh_ps = _permute_scale_cols(jnp.asarray(w_hh, jnp.float32).T, H)   # (H, 4H)
    b_ps = _permute_scale_cols(
        jnp.asarray(b_ih + b_hh, jnp.float32)[None, :], H)              # (1, 4H)

    # Recurrent weights embedded at rows [H, 2H): the wide h vector multiplies
    # zero rows everywhere else, so its don't-care lanes vanish exactly.
    w_big = jnp.zeros((four_h, four_h), jnp.float32).at[H:2 * H, :].set(whh_ps)
    wlin_big = jnp.zeros((four_h, pack), jnp.float32).at[H:2 * H, :O].set(
        jnp.asarray(w_lin, jnp.float32).T)
    blin_pad = jnp.zeros((1, pack), jnp.float32).at[0, :O].set(
        jnp.asarray(b_lin, jnp.float32))
    return (wih_ps, b_ps, w_big, wlin_big, blin_pad)


@functools.partial(jax.jit, static_argnames=("output_size",))
def lstm_forward(x, params, *, output_size):
    """x: (seq, input_size). Returns (pred_last (O,), (h, c) each (1, 1, H))."""
    wih_ps, b_ps, w_big, wlin_big, blin_pad = params
    four_h = w_big.shape[0]
    H = four_h // 4
    pack = wlin_big.shape[1]

    vmem = pl.BlockSpec(memory_space=pltpu.MemorySpace.VMEM)
    packed = pl.pallas_call(
        lstm_kernel,
        out_shape=jax.ShapeDtypeStruct((3, pack), jnp.float32),
        in_specs=[vmem] * 6,
        out_specs=vmem,
    )(jnp.asarray(x, jnp.float32), wih_ps, b_ps, w_big, wlin_big, blin_pad)

    pred_last = packed[0, :output_size]                  # (output_size,)
    hidden = (packed[1, H:2 * H].reshape(1, 1, H),       # h, like PyTorch hidden[0]
              packed[2, H:2 * H].reshape(1, 1, H))       # c, like PyTorch hidden[1]
    return pred_last, hidden


def lstm_reference(x, w_ih, w_hh, b_ih, b_hh, w_lin, b_lin):
    """Pure-JAX reference matching torch.nn.LSTM + Linear semantics."""
    seq, _ = x.shape
    H = w_hh.shape[1]
    h = jnp.zeros((H,), jnp.float32)
    c = jnp.zeros((H,), jnp.float32)
    for t in range(seq):
        gates = w_ih @ x[t] + b_ih + w_hh @ h + b_hh
        i = jax.nn.sigmoid(gates[0 * H:1 * H])
        f = jax.nn.sigmoid(gates[1 * H:2 * H])
        g = jnp.tanh(gates[2 * H:3 * H])
        o = jax.nn.sigmoid(gates[3 * H:4 * H])
        c = f * c + i * g
        h = o * jnp.tanh(c)
    pred_last = w_lin @ h + b_lin
    return pred_last, (h, c)


if __name__ == "__main__":
    seq_len = 8
    input_size = 1
    hidden_size = 32
    output_size = 8

    key = jax.random.PRNGKey(0)
    keys = jax.random.split(key, 8)
    scale = 1.0 / jnp.sqrt(hidden_size)

    # Deterministic synthetic parameters (PyTorch nn.LSTM / nn.Linear shapes).
    w_ih = jax.random.uniform(keys[0], (4 * hidden_size, input_size),
                              minval=-scale, maxval=scale, dtype=jnp.float32)
    w_hh = jax.random.uniform(keys[1], (4 * hidden_size, hidden_size),
                              minval=-scale, maxval=scale, dtype=jnp.float32)
    b_ih = jax.random.uniform(keys[2], (4 * hidden_size,),
                              minval=-scale, maxval=scale, dtype=jnp.float32)
    b_hh = jax.random.uniform(keys[3], (4 * hidden_size,),
                              minval=-scale, maxval=scale, dtype=jnp.float32)
    w_lin = jax.random.uniform(keys[4], (output_size, hidden_size),
                               minval=-scale, maxval=scale, dtype=jnp.float32)
    b_lin = jax.random.uniform(keys[5], (output_size,),
                               minval=-scale, maxval=scale, dtype=jnp.float32)

    x = jax.random.normal(keys[6], (seq_len, input_size), dtype=jnp.float32)

    # One-time parameter preparation (off the per-call path).
    params = prepare_lstm_params(w_ih, w_hh, b_ih, b_hh, w_lin, b_lin)

    pred_last, (h_fin, c_fin) = lstm_forward(x, params, output_size=output_size)
    jax.block_until_ready((pred_last, h_fin, c_fin))

    # Correctness check against pure-JAX reference.
    ref_pred, (ref_h, ref_c) = lstm_reference(x, w_ih, w_hh, b_ih, b_hh,
                                              w_lin, b_lin)
    assert jnp.allclose(pred_last, ref_pred, atol=3e-5), "pred mismatch"
    assert jnp.allclose(h_fin.reshape(-1), ref_h, atol=3e-5), "h mismatch"
    assert jnp.allclose(c_fin.reshape(-1), ref_c, atol=3e-5), "c mismatch"

    print("KERNEL_OK")
</pallas_src>

<mosaic_0001>
module attributes {stable_mosaic.version = 11 : i64} {
  func.func @lstm_kernel(%arg0: memref<8x1xf32, #tpu.memory_space<vmem>>, %arg1: memref<1x128xf32, #tpu.memory_space<vmem>>, %arg2: memref<1x128xf32, #tpu.memory_space<vmem>>, %arg3: memref<128x128xf32, #tpu.memory_space<vmem>>, %arg4: memref<128x128xf32, #tpu.memory_space<vmem>>, %arg5: memref<1x128xf32, #tpu.memory_space<vmem>>, %arg6: memref<3x128xf32, #tpu.memory_space<vmem>>) attributes {dimension_semantics = [], scalar_prefetch = 0 : i64, scratch_operands = 0 : i64, tpu.core_type = #tpu.core_type<tc>} {
    %c0 = arith.constant 0 : index
    %c0_0 = arith.constant 0 : index
    %0 = vector.load %arg2[%c0, %c0_0] : memref<1x128xf32, #tpu.memory_space<vmem>>, vector<1x128xf32>
    %c0_1 = arith.constant 0 : index
    %c0_2 = arith.constant 0 : index
    %1 = vector.load %arg3[%c0_1, %c0_2] : memref<128x128xf32, #tpu.memory_space<vmem>>, vector<128x128xf32>
    %c0_3 = arith.constant 0 : index
    %c0_4 = arith.constant 0 : index
    %2 = vector.load %arg0[%c0_3, %c0_4] : memref<8x1xf32, #tpu.memory_space<vmem>>, vector<8x1xf32>
    %c0_5 = arith.constant 0 : index
    %c0_6 = arith.constant 0 : index
    %3 = vector.load %arg1[%c0_5, %c0_6] : memref<1x128xf32, #tpu.memory_space<vmem>>, vector<1x128xf32>
    %4 = vector.broadcast %2 : vector<8x1xf32> to vector<8x128xf32>
    %5 = vector.broadcast %3 : vector<1x128xf32> to vector<8x128xf32>
    %6 = arith.mulf %4, %5 : vector<8x128xf32>
    %7 = vector.broadcast %0 : vector<1x128xf32> to vector<8x128xf32>
    %8 = arith.addf %6, %7 : vector<8x128xf32>
    %9 = tpu.iota {dimensions = array<i32: 1>} : vector<1x128xi32>
    %c64_i32 = arith.constant 64 : i32
    %10 = vector.broadcast %c64_i32 : i32 to vector<1x128xi32>
    %11 = arith.cmpi sge, %9, %10 : vector<1x128xi32>
    %c96_i32 = arith.constant 96 : i32
    %12 = vector.broadcast %c96_i32 : i32 to vector<1x128xi32>
    %13 = arith.cmpi slt, %9, %12 : vector<1x128xi32>
    %14 = arith.andi %11, %13 : vector<1x128xi1>
    %15 = vector.extract_strided_slice %8 {offsets = [0, 0], sizes = [1, 128], strides = [1, 1]} : vector<8x128xf32> to vector<1x128xf32>
    %16 = math.tanh %15 : vector<1x128xf32>
    %cst = arith.constant 5.000000e-01 : f32
    %17 = vector.broadcast %cst : f32 to vector<1x128xf32>
    %18 = arith.mulf %17, %16 : vector<1x128xf32>
    %cst_7 = arith.constant 5.000000e-01 : f32
    %19 = vector.broadcast %cst_7 : f32 to vector<1x128xf32>
    %20 = arith.addf %18, %19 : vector<1x128xf32>
    %21 = arith.select %14, %16, %20 : vector<1x128xi1>, vector<1x128xf32>
    %22 = vector.extract_strided_slice %21 {offsets = [0, 96], sizes = [1, 32], strides = [1, 1]} : vector<1x128xf32> to vector<1x32xf32>
    %23 = vector.extract_strided_slice %21 {offsets = [0, 0], sizes = [1, 96], strides = [1, 1]} : vector<1x128xf32> to vector<1x96xf32>
    %24 = tpu.concatenate %22, %23 in 1 : vector<1x32xf32>, vector<1x96xf32> -> vector<1x128xf32>
    %25 = arith.mulf %21, %24 : vector<1x128xf32>
    %26 = vector.extract_strided_slice %25 {offsets = [0, 64], sizes = [1, 64], strides = [1, 1]} : vector<1x128xf32> to vector<1x64xf32>
    %27 = vector.extract_strided_slice %25 {offsets = [0, 0], sizes = [1, 64], strides = [1, 1]} : vector<1x128xf32> to vector<1x64xf32>
    %28 = tpu.concatenate %26, %27 in 1 : vector<1x64xf32>, vector<1x64xf32> -> vector<1x128xf32>
    %29 = math.tanh %28 : vector<1x128xf32>
    %30 = arith.mulf %24, %29 : vector<1x128xf32>
    %31 = vector.extract_strided_slice %8 {offsets = [1, 0], sizes = [1, 128], strides = [1, 1]} : vector<8x128xf32> to vector<1x128xf32>
    %cst_8 = arith.constant dense<0.000000e+00> : vector<1x128xf32>
    %32 = tpu.matmul %30, %1, %cst_8 {dimension_numbers = #tpu.dot_dimension_numbers<[1], [0], [0], [1], [0, 0, 1, 1], [], []>} : vector<1x128xf32>, vector<128x128xf32>, vector<1x128xf32> -> vector<1x128xf32>
    %33 = arith.addf %31, %32 : vector<1x128xf32>
    %34 = math.tanh %33 : vector<1x128xf32>
    %cst_9 = arith.constant 5.000000e-01 : f32
    %35 = vector.broadcast %cst_9 : f32 to vector<1x128xf32>
    %36 = arith.mulf %35, %34 : vector<1x128xf32>
    %cst_10 = arith.constant 5.000000e-01 : f32
    %37 = vector.broadcast %cst_10 : f32 to vector<1x128xf32>
    %38 = arith.addf %36, %37 : vector<1x128xf32>
    %39 = arith.select %14, %34, %38 : vector<1x128xi1>, vector<1x128xf32>
    %40 = vector.extract_strided_slice %39 {offsets = [0, 96], sizes = [1, 32], strides = [1, 1]} : vector<1x128xf32> to vector<1x32xf32>
    %41 = vector.extract_strided_slice %39 {offsets = [0, 0], sizes = [1, 96], strides = [1, 1]} : vector<1x128xf32> to vector<1x96xf32>
    %42 = tpu.concatenate %40, %41 in 1 : vector<1x32xf32>, vector<1x96xf32> -> vector<1x128xf32>
    %43 = arith.mulf %39, %42 : vector<1x128xf32>
    %44 = vector.extract_strided_slice %43 {offsets = [0, 64], sizes = [1, 64], strides = [1, 1]} : vector<1x128xf32> to vector<1x64xf32>
    %45 = vector.extract_strided_slice %43 {offsets = [0, 0], sizes = [1, 64], strides = [1, 1]} : vector<1x128xf32> to vector<1x64xf32>
    %46 = tpu.concatenate %44, %45 in 1 : vector<1x64xf32>, vector<1x64xf32> -> vector<1x128xf32>
    %47 = arith.mulf %39, %28 : vector<1x128xf32>
    %48 = arith.addf %46, %47 : vector<1x128xf32>
    %49 = math.tanh %48 : vector<1x128xf32>
    %50 = arith.mulf %42, %49 : vector<1x128xf32>
    %51 = vector.extract_strided_slice %8 {offsets = [2, 0], sizes = [1, 128], strides = [1, 1]} : vector<8x128xf32> to vector<1x128xf32>
    %cst_11 = arith.constant dense<0.000000e+00> : vector<1x128xf32>
    %52 = tpu.matmul %50, %1, %cst_11 {dimension_numbers = #tpu.dot_dimension_numbers<[1], [0], [0], [1], [0, 0, 1, 1], [], []>} : vector<1x128xf32>, vector<128x128xf32>, vector<1x128xf32> -> vector<1x128xf32>
    %53 = arith.addf %51, %52 : vector<1x128xf32>
    %54 = math.tanh %53 : vector<1x128xf32>
    %cst_12 = arith.constant 5.000000e-01 : f32
    %55 = vector.broadcast %cst_12 : f32 to vector<1x128xf32>
    %56 = arith.mulf %55, %54 : vector<1x128xf32>
    %cst_13 = arith.constant 5.000000e-01 : f32
    %57 = vector.broadcast %cst_13 : f32 to vector<1x128xf32>
    %58 = arith.addf %56, %57 : vector<1x128xf32>
    %59 = arith.select %14, %54, %58 : vector<1x128xi1>, vector<1x128xf32>
    %60 = vector.extract_strided_slice %59 {offsets = [0, 96], sizes = [1, 32], strides = [1, 1]} : vector<1x128xf32> to vector<1x32xf32>
    %61 = vector.extract_strided_slice %59 {offsets = [0, 0], sizes = [1, 96], strides = [1, 1]} : vector<1x128xf32> to vector<1x96xf32>
    %62 = tpu.concatenate %60, %61 in 1 : vector<1x32xf32>, vector<1x96xf32> -> vector<1x128xf32>
    %63 = arith.mulf %59, %62 : vector<1x128xf32>
    %64 = vector.extract_strided_slice %63 {offsets = [0, 64], sizes = [1, 64], strides = [1, 1]} : vector<1x128xf32> to vector<1x64xf32>
    %65 = vector.extract_strided_slice %63 {offsets = [0, 0], sizes = [1, 64], strides = [1, 1]} : vector<1x128xf32> to vector<1x64xf32>
    %66 = tpu.concatenate %64, %65 in 1 : vector<1x64xf32>, vector<1x64xf32> -> vector<1x128xf32>
    %67 = arith.mulf %59, %48 : vector<1x128xf32>
    %68 = arith.addf %66, %67 : vector<1x128xf32>
    %69 = math.tanh %68 : vector<1x128xf32>
    %70 = arith.mulf %62, %69 : vector<1x128xf32>
    %71 = vector.extract_strided_slice %8 {offsets = [3, 0], sizes = [1, 128], strides = [1, 1]} : vector<8x128xf32> to vector<1x128xf32>
    %cst_14 = arith.constant dense<0.000000e+00> : vector<1x128xf32>
    %72 = tpu.matmul %70, %1, %cst_14 {dimension_numbers = #tpu.dot_dimension_numbers<[1], [0], [0], [1], [0, 0, 1, 1], [], []>} : vector<1x128xf32>, vector<128x128xf32>, vector<1x128xf32> -> vector<1x128xf32>
    %73 = arith.addf %71, %72 : vector<1x128xf32>
    %74 = math.tanh %73 : vector<1x128xf32>
    %cst_15 = arith.constant 5.000000e-01 : f32
    %75 = vector.broadcast %cst_15 : f32 to vector<1x128xf32>
    %76 = arith.mulf %75, %74 : vector<1x128xf32>
    %cst_16 = arith.constant 5.000000e-01 : f32
    %77 = vector.broadcast %cst_16 : f32 to vector<1x128xf32>
    %78 = arith.addf %76, %77 : vector<1x128xf32>
    %79 = arith.select %14, %74, %78 : vector<1x128xi1>, vector<1x128xf32>
    %80 = vector.extract_strided_slice %79 {offsets = [0, 96], sizes = [1, 32], strides = [1, 1]} : vector<1x128xf32> to vector<1x32xf32>
    %81 = vector.extract_strided_slice %79 {offsets = [0, 0], sizes = [1, 96], strides = [1, 1]} : vector<1x128xf32> to vector<1x96xf32>
    %82 = tpu.concatenate %80, %81 in 1 : vector<1x32xf32>, vector<1x96xf32> -> vector<1x128xf32>
    %83 = arith.mulf %79, %82 : vector<1x128xf32>
    %84 = vector.extract_strided_slice %83 {offsets = [0, 64], sizes = [1, 64], strides = [1, 1]} : vector<1x128xf32> to vector<1x64xf32>
    %85 = vector.extract_strided_slice %83 {offsets = [0, 0], sizes = [1, 64], strides = [1, 1]} : vector<1x128xf32> to vector<1x64xf32>
    %86 = tpu.concatenate %84, %85 in 1 : vector<1x64xf32>, vector<1x64xf32> -> vector<1x128xf32>
    %87 = arith.mulf %79, %68 : vector<1x128xf32>
    %88 = arith.addf %86, %87 : vector<1x128xf32>
    %89 = math.tanh %88 : vector<1x128xf32>
    %90 = arith.mulf %82, %89 : vector<1x128xf32>
    %91 = vector.extract_strided_slice %8 {offsets = [4, 0], sizes = [1, 128], strides = [1, 1]} : vector<8x128xf32> to vector<1x128xf32>
    %cst_17 = arith.constant dense<0.000000e+00> : vector<1x128xf32>
    %92 = tpu.matmul %90, %1, %cst_17 {dimension_numbers = #tpu.dot_dimension_numbers<[1], [0], [0], [1], [0, 0, 1, 1], [], []>} : vector<1x128xf32>, vector<128x128xf32>, vector<1x128xf32> -> vector<1x128xf32>
    %93 = arith.addf %91, %92 : vector<1x128xf32>
    %94 = math.tanh %93 : vector<1x128xf32>
    %cst_18 = arith.constant 5.000000e-01 : f32
    %95 = vector.broadcast %cst_18 : f32 to vector<1x128xf32>
    %96 = arith.mulf %95, %94 : vector<1x128xf32>
    %cst_19 = arith.constant 5.000000e-01 : f32
    %97 = vector.broadcast %cst_19 : f32 to vector<1x128xf32>
    %98 = arith.addf %96, %97 : vector<1x128xf32>
    %99 = arith.select %14, %94, %98 : vector<1x128xi1>, vector<1x128xf32>
    %100 = vector.extract_strided_slice %99 {offsets = [0, 96], sizes = [1, 32], strides = [1, 1]} : vector<1x128xf32> to vector<1x32xf32>
    %101 = vector.extract_strided_slice %99 {offsets = [0, 0], sizes = [1, 96], strides = [1, 1]} : vector<1x128xf32> to vector<1x96xf32>
    %102 = tpu.concatenate %100, %101 in 1 : vector<1x32xf32>, vector<1x96xf32> -> vector<1x128xf32>
    %103 = arith.mulf %99, %102 : vector<1x128xf32>
    %104 = vector.extract_strided_slice %103 {offsets = [0, 64], sizes = [1, 64], strides = [1, 1]} : vector<1x128xf32> to vector<1x64xf32>
    %105 = vector.extract_strided_slice %103 {offsets = [0, 0], sizes = [1, 64], strides = [1, 1]} : vector<1x128xf32> to vector<1x64xf32>
    %106 = tpu.concatenate %104, %105 in 1 : vector<1x64xf32>, vector<1x64xf32> -> vector<1x128xf32>
    %107 = arith.mulf %99, %88 : vector<1x128xf32>
    %108 = arith.addf %106, %107 : vector<1x128xf32>
    %109 = math.tanh %108 : vector<1x128xf32>
    %110 = arith.mulf %102, %109 : vector<1x128xf32>
    %111 = vector.extract_strided_slice %8 {offsets = [5, 0], sizes = [1, 128], strides = [1, 1]} : vector<8x128xf32> to vector<1x128xf32>
    %cst_20 = arith.constant dense<0.000000e+00> : vector<1x128xf32>
    %112 = tpu.matmul %110, %1, %cst_20 {dimension_numbers = #tpu.dot_dimension_numbers<[1], [0], [0], [1], [0, 0, 1, 1], [], []>} : vector<1x128xf32>, vector<128x128xf32>, vector<1x128xf32> -> vector<1x128xf32>
    %113 = arith.addf %111, %112 : vector<1x128xf32>
    %114 = math.tanh %113 : vector<1x128xf32>
    %cst_21 = arith.constant 5.000000e-01 : f32
    %115 = vector.broadcast %cst_21 : f32 to vector<1x128xf32>
    %116 = arith.mulf %115, %114 : vector<1x128xf32>
    %cst_22 = arith.constant 5.000000e-01 : f32
    %117 = vector.broadcast %cst_22 : f32 to vector<1x128xf32>
    %118 = arith.addf %116, %117 : vector<1x128xf32>
    %119 = arith.select %14, %114, %118 : vector<1x128xi1>, vector<1x128xf32>
    %120 = vector.extract_strided_slice %119 {offsets = [0, 96], sizes = [1, 32], strides = [1, 1]} : vector<1x128xf32> to vector<1x32xf32>
    %121 = vector.extract_strided_slice %119 {offsets = [0, 0], sizes = [1, 96], strides = [1, 1]} : vector<1x128xf32> to vector<1x96xf32>
    %122 = tpu.concatenate %120, %121 in 1 : vector<1x32xf32>, vector<1x96xf32> -> vector<1x128xf32>
    %123 = arith.mulf %119, %122 : vector<1x128xf32>
    %124 = vector.extract_strided_slice %123 {offsets = [0, 64], sizes = [1, 64], strides = [1, 1]} : vector<1x128xf32> to vector<1x64xf32>
    %125 = vector.extract_strided_slice %123 {offsets = [0, 0], sizes = [1, 64], strides = [1, 1]} : vector<1x128xf32> to vector<1x64xf32>
    %126 = tpu.concatenate %124, %125 in 1 : vector<1x64xf32>, vector<1x64xf32> -> vector<1x128xf32>
    %127 = arith.mulf %119, %108 : vector<1x128xf32>
    %128 = arith.addf %126, %127 : vector<1x128xf32>
    %129 = math.tanh %128 : vector<1x128xf32>
    %130 = arith.mulf %122, %129 : vector<1x128xf32>
    %131 = vector.extract_strided_slice %8 {offsets = [6, 0], sizes = [1, 128], strides = [1, 1]} : vector<8x128xf32> to vector<1x128xf32>
    %cst_23 = arith.constant dense<0.000000e+00> : vector<1x128xf32>
    %132 = tpu.matmul %130, %1, %cst_23 {dimension_numbers = #tpu.dot_dimension_numbers<[1], [0], [0], [1], [0, 0, 1, 1], [], []>} : vector<1x128xf32>, vector<128x128xf32>, vector<1x128xf32> -> vector<1x128xf32>
    %133 = arith.addf %131, %132 : vector<1x128xf32>
    %134 = math.tanh %133 : vector<1x128xf32>
    %cst_24 = arith.constant 5.000000e-01 : f32
    %135 = vector.broadcast %cst_24 : f32 to vector<1x128xf32>
    %136 = arith.mulf %135, %134 : vector<1x128xf32>
    %cst_25 = arith.constant 5.000000e-01 : f32
    %137 = vector.broadcast %cst_25 : f32 to vector<1x128xf32>
    %138 = arith.addf %136, %137 : vector<1x128xf32>
    %139 = arith.select %14, %134, %138 : vector<1x128xi1>, vector<1x128xf32>
    %140 = vector.extract_strided_slice %139 {offsets = [0, 96], sizes = [1, 32], strides = [1, 1]} : vector<1x128xf32> to vector<1x32xf32>
    %141 = vector.extract_strided_slice %139 {offsets = [0, 0], sizes = [1, 96], strides = [1, 1]} : vector<1x128xf32> to vector<1x96xf32>
    %142 = tpu.concatenate %140, %141 in 1 : vector<1x32xf32>, vector<1x96xf32> -> vector<1x128xf32>
    %143 = arith.mulf %139, %142 : vector<1x128xf32>
    %144 = vector.extract_strided_slice %143 {offsets = [0, 64], sizes = [1, 64], strides = [1, 1]} : vector<1x128xf32> to vector<1x64xf32>
    %145 = vector.extract_strided_slice %143 {offsets = [0, 0], sizes = [1, 64], strides = [1, 1]} : vector<1x128xf32> to vector<1x64xf32>
    %146 = tpu.concatenate %144, %145 in 1 : vector<1x64xf32>, vector<1x64xf32> -> vector<1x128xf32>
    %147 = arith.mulf %139, %128 : vector<1x128xf32>
    %148 = arith.addf %146, %147 : vector<1x128xf32>
    %149 = math.tanh %148 : vector<1x128xf32>
    %150 = arith.mulf %142, %149 : vector<1x128xf32>
    %151 = vector.extract_strided_slice %8 {offsets = [7, 0], sizes = [1, 128], strides = [1, 1]} : vector<8x128xf32> to vector<1x128xf32>
    %cst_26 = arith.constant dense<0.000000e+00> : vector<1x128xf32>
    %152 = tpu.matmul %150, %1, %cst_26 {dimension_numbers = #tpu.dot_dimension_numbers<[1], [0], [0], [1], [0, 0, 1, 1], [], []>} : vector<1x128xf32>, vector<128x128xf32>, vector<1x128xf32> -> vector<1x128xf32>
    %153 = arith.addf %151, %152 : vector<1x128xf32>
    %154 = math.tanh %153 : vector<1x128xf32>
    %cst_27 = arith.constant 5.000000e-01 : f32
    %155 = vector.broadcast %cst_27 : f32 to vector<1x128xf32>
    %156 = arith.mulf %155, %154 : vector<1x128xf32>
    %cst_28 = arith.constant 5.000000e-01 : f32
    %157 = vector.broadcast %cst_28 : f32 to vector<1x128xf32>
    %158 = arith.addf %156, %157 : vector<1x128xf32>
    %159 = arith.select %14, %154, %158 : vector<1x128xi1>, vector<1x128xf32>
    %160 = vector.extract_strided_slice %159 {offsets = [0, 96], sizes = [1, 32], strides = [1, 1]} : vector<1x128xf32> to vector<1x32xf32>
    %161 = vector.extract_strided_slice %159 {offsets = [0, 0], sizes = [1, 96], strides = [1, 1]} : vector<1x128xf32> to vector<1x96xf32>
    %162 = tpu.concatenate %160, %161 in 1 : vector<1x32xf32>, vector<1x96xf32> -> vector<1x128xf32>
    %163 = arith.mulf %159, %162 : vector<1x128xf32>
    %164 = vector.extract_strided_slice %163 {offsets = [0, 64], sizes = [1, 64], strides = [1, 1]} : vector<1x128xf32> to vector<1x64xf32>
    %165 = vector.extract_strided_slice %163 {offsets = [0, 0], sizes = [1, 64], strides = [1, 1]} : vector<1x128xf32> to vector<1x64xf32>
    %166 = tpu.concatenate %164, %165 in 1 : vector<1x64xf32>, vector<1x64xf32> -> vector<1x128xf32>
    %167 = arith.mulf %159, %148 : vector<1x128xf32>
    %168 = arith.addf %166, %167 : vector<1x128xf32>
    %169 = math.tanh %168 : vector<1x128xf32>
    %170 = arith.mulf %162, %169 : vector<1x128xf32>
    %c0_29 = arith.constant 0 : index
    %c0_30 = arith.constant 0 : index
    %171 = vector.load %arg4[%c0_29, %c0_30] : memref<128x128xf32, #tpu.memory_space<vmem>>, vector<128x128xf32>
    %cst_31 = arith.constant dense<0.000000e+00> : vector<1x128xf32>
    %172 = tpu.matmul %170, %171, %cst_31 {dimension_numbers = #tpu.dot_dimension_numbers<[1], [0], [0], [1], [0, 0, 1, 1], [], []>} : vector<1x128xf32>, vector<128x128xf32>, vector<1x128xf32> -> vector<1x128xf32>
    %c0_32 = arith.constant 0 : index
    %c0_33 = arith.constant 0 : index
    %173 = vector.load %arg5[%c0_32, %c0_33] : memref<1x128xf32, #tpu.memory_space<vmem>>, vector<1x128xf32>
    %174 = arith.addf %172, %173 : vector<1x128xf32>
    %175 = tpu.concatenate %174, %170, %168 in 0 : vector<1x128xf32>, vector<1x128xf32>, vector<1x128xf32> -> vector<3x128xf32>
    %c0_34 = arith.constant 0 : index
    %c0_35 = arith.constant 0 : index
    %176 = vector.load %arg6[%c0_34, %c0_35] : memref<3x128xf32, #tpu.memory_space<vmem>>, vector<3x128xf32>
    tpu.vector_store %arg6[%c0_34, %c0_35], %175 {strides = array<i32>} : memref<3x128xf32, #tpu.memory_space<vmem>>, vector<3x128xf32>,
    return
  }
}

</mosaic_0001>

<llo_original>
// kernel: lstm_forward.1
$region0: #{lstm_forward.1}
  #allocation0 [shape = 'u32[]', space=smem, size = 0x4, offset = 0x4, fixed_abs, tag = 'smem constant byte address 0x4 - core index']
  #allocation1 [shape = 'u32[72,128]{1,0:T(1,128)}', space=vmem, size = 0x9000, scoped, tag = 'internal scratch']
  %s0 = inlined_call_operand.vmem [shape: f32[8,1], index: 0, kind: input, shape index: {}]
  %s1 = inlined_call_operand.vmem [shape: f32[1,128], index: 1, kind: input, shape index: {}]
  %s2 = inlined_call_operand.vmem [shape: f32[1,128], index: 2, kind: input, shape index: {}]
  %s3 = inlined_call_operand.hbm [shape: f32[128,128], index: 3, kind: input, shape index: {}]
  %s4 = inlined_call_operand.hbm [shape: f32[128,128], index: 4, kind: input, shape index: {}]
  %s5 = inlined_call_operand.vmem [shape: f32[1,128], index: 5, kind: input, shape index: {}]
  %s6 = inlined_call_operand.vmem [shape: f32[3,128], index: 6, kind: output, shape index: {}]
  %s7 = sld [smem:[#allocation0]]
  $region42: #{lstm_forward.1} parent=0
    _
  %s9 = ssub.s32 1, %s7
  %s10 = scalar_select 0, %s9, %s7
  $region1: #{lstm_forward.1} parent=0
    #allocation2 [shape = 'u8[65536]{0}', space=vmem, size = 0x10000, scoped, tag = 'input window, operand 3, single buffered']
    #allocation3 [shape = 's32[1]{0}', space=sflag, size = 0x4, scoped, tag = 'scoped memory for lstm_forward.1']
    #allocation4 [shape = 'u8[65536]{0}', space=vmem, size = 0x10000, scoped, tag = 'input window, operand 4, single buffered']
    #allocation5 [shape = 's32[1]{0}', space=sflag, size = 0x4, scoped, tag = 'scoped memory for lstm_forward.1']
    %11 = vsyncpa [#allocation3], 0
    %12 = vsyncpa [#allocation5], 0
    // Predicated region
    $region2: #{lstm_forward.1} parent=1 // pred_check
      _
    $region3: #{lstm_forward.1} parent=1 // pred_check_branch
      %14 = sbr.rel (0) target = $region5
    $region4: #{lstm_forward.1} parent=1 // pred_region
      _
    $region5: #{lstm_forward.1} parent=1 // pred_fallthru
      _
    // Predicated region
    $region6: #{lstm_forward.1} parent=1 // pred_check
      _
    $region7: #{lstm_forward.1} parent=1 // pred_check_branch
      %16 = sbr.rel (0) target = $region9
    $region8: #{lstm_forward.1} parent=1 // pred_region
      _
    $region9: #{lstm_forward.1} parent=1 // pred_fallthru
      _
    // Predicated region
    $region10: #{lstm_forward.1} parent=1 // pred_check
      _
    $region11: #{lstm_forward.1} parent=1 // pred_check_branch
      %18 = sbr.rel (0) target = $region13
    $region12: #{lstm_forward.1} parent=1 // pred_region
      _
    $region13: #{lstm_forward.1} parent=1 // pred_fallthru
      _
    // Predicated region
    $region14: #{lstm_forward.1} parent=1 // pred_check
      _
    $region15: #{lstm_forward.1} parent=1 // pred_check_branch
      %20 = sbr.rel (0) target = $region17
    $region16: #{lstm_forward.1} parent=1 // pred_region
      %22 = vsyncadd [#allocation3], 0
      %s23 = sshll.u32 %s3, 4
      %s24 = int_to_ptr.hbm [resolvable:$true] %s23
      %s25 = sshll.u32 [#allocation2], 4
      %s26 = int_to_ptr.vmem [resolvable:$true] %s25
      %31 = dma.hbm_to_vmem [thread:$0]  %s24, 2048, %s26, [#allocation3], 128, 128, 8
    $region17: #{lstm_forward.1} parent=1 // pred_fallthru
      _
    // Predicated region
    $region18: #{lstm_forward.1} parent=1 // pred_check
      _
    $region19: #{lstm_forward.1} parent=1 // pred_check_branch
      %33 = sbr.rel (0) target = $region21
    $region20: #{lstm_forward.1} parent=1 // pred_region
      %35 = vsyncadd [#allocation5], 0
      %s36 = sshll.u32 %s4, 4
      %s37 = int_to_ptr.hbm [resolvable:$true] %s36
      %s38 = sshll.u32 [#allocation4], 4
      %s39 = int_to_ptr.vmem [resolvable:$true] %s38
      %44 = dma.hbm_to_vmem [thread:$0]  %s37, 2048, %s39, [#allocation5], 128, 128, 8
    $region21: #{lstm_forward.1} parent=1 // pred_fallthru
      _
    // Predicated region
    $region22: #{lstm_forward.1} parent=1 // pred_check
      _
    $region23: #{lstm_forward.1} parent=1 // pred_check_branch
      %46 = sbr.rel (0) target = $region25
    $region24: #{lstm_forward.1} parent=1 // pred_region
      _
    $region25: #{lstm_forward.1} parent=1 // pred_fallthru
      _
    // Predicated region
    $region26: #{lstm_forward.1} parent=1 // pred_check
      _
    $region27: #{lstm_forward.1} parent=1 // pred_check_branch
      %48 = sbr.rel (0) target = $region29
    $region28: #{lstm_forward.1} parent=1 // pred_region
      %50 = dma.done [#allocation3], 2048
    $region29: #{lstm_forward.1} parent=1 // pred_fallthru
      _
    // Predicated region
    $region30: #{lstm_forward.1} parent=1 // pred_check
      _
    $region31: #{lstm_forward.1} parent=1 // pred_check_branch
      %52 = sbr.rel (0) target = $region33
    $region32: #{lstm_forward.1} parent=1 // pred_region
      %54 = dma.done [#allocation5], 2048
    $region33: #{lstm_forward.1} parent=1 // pred_fallthru
      _
    %v55 = vld [vmem:[%s2] sm:$0x1]
    %v56 = vld [vmem:[#allocation2] sm:$0xff]
    %v57 = vld [vmem:[#allocation2 + $0x8] sm:$0xff]
    %v58 = vld [vmem:[#allocation2 + $0x10] sm:$0xff]
    %v59 = vld [vmem:[#allocation2 + $0x18] sm:$0xff]
    %v60 = vld [vmem:[#allocation2 + $0x20] sm:$0xff]
    %v61 = vld [vmem:[#allocation2 + $0x28] sm:$0xff]
    %v62 = vld [vmem:[#allocation2 + $0x30] sm:$0xff]
    %v63 = vld [vmem:[#allocation2 + $0x38] sm:$0xff]
    %v64 = vld [vmem:[#allocation2 + $0x40] sm:$0xff]
    %v65 = vld [vmem:[#allocation2 + $0x48] sm:$0xff]
    %v66 = vld [vmem:[#allocation2 + $0x50] sm:$0xff]
    %v67 = vld [vmem:[#allocation2 + $0x58] sm:$0xff]
    %v68 = vld [vmem:[#allocation2 + $0x60] sm:$0xff]
    %v69 = vld [vmem:[#allocation2 + $0x68] sm:$0xff]
    %v70 = vld [vmem:[#allocation2 + $0x70] sm:$0xff]
    %v71 = vld [vmem:[#allocation2 + $0x78] sm:$0xff]
    %v72 = vld [vmem:[%s0] sm:$0xff]
    %v73 = vld [vmem:[%s1] sm:$0x1]
    %75 = vset.pattern.permute.xlu0 0
    %76 = vperm.xlu0 %75, %v72
    %v77 = vpop.permute.xlu0 %76
    %v80 = vperm.slane %v73, 0
    %v82 = vmul.f32 %v77, %v80
    %v84 = vperm.slane %v55, 0
    %v86 = vadd.f32 %v82, %v84
    %v87 = vlaneseq
    %v88 = vand.u32 %v87, 127
    %vm89 = vcmp.ge.s32.totalorder %v88, 64
    %vm90 = vcmp.lt.s32.totalorder %v88, 96
    %vm91 = vmand %vm89, %vm90
    %v92 = vtanh.pop %v86
    %v93 = vmul.f32 %v92, 0.5
    %v94 = vadd.f32 %v93, 0.5
    %v95 = vsel %vm91, %v92, %v94
    %97 = vrot.lane.b32.xlu0 %v95, 32
    %v98 = vpop.permute.xlu0 %97
    %v100 = vmul.f32 %v95, %v98
    %102 = vrot.lane.b32.xlu0 %v100, 64
    %v103 = vpop.permute.xlu0 %102
    %v105 = vtanh.pop %v103
    %v106 = vmul.f32 %v98, %v105
    %107 = vmatpush.msra.mxu0 %v71
    %108 = vmatpush.msra.mxu0 %v70
    %109 = vmatpush.msra.mxu0 %v69
    %110 = vmatpush.msra.mxu0 %v68
    %111 = vmatpush.msra.mxu0 %v67
    %112 = vmatpush.msra.mxu0 %v66
    %113 = vmatpush.msra.mxu0 %v65
    %114 = vmatpush.msra.mxu0 %v64
    %115 = vmatpush.msra.mxu0 %v63
    %116 = vmatpush.msra.mxu0 %v62
    %117 = vmatpush.msra.mxu0 %v61
    %118 = vmatpush.msra.mxu0 %v60
    %119 = vmatpush.msra.mxu0 %v59
    %120 = vmatpush.msra.mxu0 %v58
    %121 = vmatpush.msra.mxu0 %v57
    %122 = vmatpush.msra.mxu0 %v56
    %123 = vmatmul.f32.gmra.mxu0 %v106
    %v124 = vpop.f32.mrf.mxu0
    %v125 = vadd.f32 0.0, %v124
    %126 = vdwg.mxu0
    %v128 = vrot.slane %v125, 7
    %v130 = vadd.f32 %v86, %v128
    %v131 = vtanh.pop %v130
    %v132 = vmul.f32 %v131, 0.5
    %v133 = vadd.f32 %v132, 0.5
    %v134 = vsel %vm91, %v131, %v133
    %136 = vrot.lane.b32.xlu0 %v134, 32
    %v137 = vpop.permute.xlu0 %136
    %v139 = vmul.f32 %v134, %v137
    %141 = vrot.lane.b32.xlu0 %v139, 64
    %v142 = vpop.permute.xlu0 %141
    %v145 = vrot.slane %v103, 7
    %v147 = vmul.f32 %v134, %v145
    %v148 = vadd.f32 %v142, %v147
    %v149 = vtanh.pop %v148
    %v150 = vmul.f32 %v137, %v149
    %v152 = vrot.slane %v150, 1
    %154 = vmatpush.msra.mxu0 %v71
    %155 = vmatpush.msra.mxu0 %v70
    %156 = vmatpush.msra.mxu0 %v69
    %157 = vmatpush.msra.mxu0 %v68
    %158 = vmatpush.msra.mxu0 %v67
    %159 = vmatpush.msra.mxu0 %v66
    %160 = vmatpush.msra.mxu0 %v65
    %161 = vmatpush.msra.mxu0 %v64
    %162 = vmatpush.msra.mxu0 %v63
    %163 = vmatpush.msra.mxu0 %v62
    %164 = vmatpush.msra.mxu0 %v61
    %165 = vmatpush.msra.mxu0 %v60
    %166 = vmatpush.msra.mxu0 %v59
    %167 = vmatpush.msra.mxu0 %v58
    %168 = vmatpush.msra.mxu0 %v57
    %169 = vmatpush.msra.mxu0 %v56
    %170 = vmatmul.f32.gmra.mxu0 %v152
    %v171 = vpop.f32.mrf.mxu0
    %v172 = vadd.f32 0.0, %v171
    %173 = vdwg.mxu0
    %v175 = vrot.slane %v172, 6
    %v177 = vadd.f32 %v86, %v175
    %v178 = vtanh.pop %v177
    %v179 = vmul.f32 %v178, 0.5
    %v180 = vadd.f32 %v179, 0.5
    %v181 = vsel %vm91, %v178, %v180
    %183 = vrot.lane.b32.xlu0 %v181, 32
    %v184 = vpop.permute.xlu0 %183
    %v186 = vmul.f32 %v181, %v184
    %188 = vrot.lane.b32.xlu0 %v186, 64
    %v189 = vpop.permute.xlu0 %188
    %v192 = vrot.slane %v148, 7
    %v194 = vmul.f32 %v181, %v192
    %v195 = vadd.f32 %v189, %v194
    %v196 = vtanh.pop %v195
    %v197 = vmul.f32 %v184, %v196
    %v199 = vrot.slane %v197, 2
    %201 = vmatpush.msra.mxu0 %v71
    %202 = vmatpush.msra.mxu0 %v70
    %203 = vmatpush.msra.mxu0 %v69
    %204 = vmatpush.msra.mxu0 %v68
    %205 = vmatpush.msra.mxu0 %v67
    %206 = vmatpush.msra.mxu0 %v66
    %207 = vmatpush.msra.mxu0 %v65
    %208 = vmatpush.msra.mxu0 %v64
    %209 = vmatpush.msra.mxu0 %v63
    %210 = vmatpush.msra.mxu0 %v62
    %211 = vmatpush.msra.mxu0 %v61
    %212 = vmatpush.msra.mxu0 %v60
    %213 = vmatpush.msra.mxu0 %v59
    %214 = vmatpush.msra.mxu0 %v58
    %215 = vmatpush.msra.mxu0 %v57
    %216 = vmatpush.msra.mxu0 %v56
    %217 = vmatmul.f32.gmra.mxu0 %v199
    %v218 = vpop.f32.mrf.mxu0
    %v219 = vadd.f32 0.0, %v218
    %220 = vdwg.mxu0
    %v222 = vrot.slane %v219, 5
    %v224 = vadd.f32 %v86, %v222
    %v225 = vtanh.pop %v224
    %v226 = vmul.f32 %v225, 0.5
    %v227 = vadd.f32 %v226, 0.5
    %v228 = vsel %vm91, %v225, %v227
    %230 = vrot.lane.b32.xlu0 %v228, 32
    %v231 = vpop.permute.xlu0 %230
    %v233 = vmul.f32 %v228, %v231
    %235 = vrot.lane.b32.xlu0 %v233, 64
    %v236 = vpop.permute.xlu0 %235
    %v239 = vrot.slane %v195, 7
    %v241 = vmul.f32 %v228, %v239
    %v242 = vadd.f32 %v236, %v241
    %v243 = vtanh.pop %v242
    %v244 = vmul.f32 %v231, %v243
    %v246 = vrot.slane %v244, 3
    %248 = vmatpush.msra.mxu0 %v71
    %249 = vmatpush.msra.mxu0 %v70
    %250 = vmatpush.msra.mxu0 %v69
    %251 = vmatpush.msra.mxu0 %v68
    %252 = vmatpush.msra.mxu0 %v67
    %253 = vmatpush.msra.mxu0 %v66
    %254 = vmatpush.msra.mxu0 %v65
    %255 = vmatpush.msra.mxu0 %v64
    %256 = vmatpush.msra.mxu0 %v63
    %257 = vmatpush.msra.mxu0 %v62
    %258 = vmatpush.msra.mxu0 %v61
    %259 = vmatpush.msra.mxu0 %v60
    %260 = vmatpush.msra.mxu0 %v59
    %261 = vmatpush.msra.mxu0 %v58
    %262 = vmatpush.msra.mxu0 %v57
    %263 = vmatpush.msra.mxu0 %v56
    %264 = vmatmul.f32.gmra.mxu0 %v246
    %v265 = vpop.f32.mrf.mxu0
    %v266 = vadd.f32 0.0, %v265
    %267 = vdwg.mxu0
    %v269 = vrot.slane %v266, 4
    %v271 = vadd.f32 %v86, %v269
    %v272 = vtanh.pop %v271
    %v273 = vmul.f32 %v272, 0.5
    %v274 = vadd.f32 %v273, 0.5
    %v275 = vsel %vm91, %v272, %v274
    %277 = vrot.lane.b32.xlu0 %v275, 32
    %v278 = vpop.permute.xlu0 %277
    %v280 = vmul.f32 %v275, %v278
    %282 = vrot.lane.b32.xlu0 %v280, 64
    %v283 = vpop.permute.xlu0 %282
    %v286 = vrot.slane %v242, 7
    %v288 = vmul.f32 %v275, %v286
    %v289 = vadd.f32 %v283, %v288
    %v290 = vtanh.pop %v289
    %v291 = vmul.f32 %v278, %v290
    %v293 = vrot.slane %v291, 4
    %295 = vmatpush.msra.mxu0 %v71
    %296 = vmatpush.msra.mxu0 %v70
    %297 = vmatpush.msra.mxu0 %v69
    %298 = vmatpush.msra.mxu0 %v68
    %299 = vmatpush.msra.mxu0 %v67
    %300 = vmatpush.msra.mxu0 %v66
    %301 = vmatpush.msra.mxu0 %v65
    %302 = vmatpush.msra.mxu0 %v64
    %303 = vmatpush.msra.mxu0 %v63
    %304 = vmatpush.msra.mxu0 %v62
    %305 = vmatpush.msra.mxu0 %v61
    %306 = vmatpush.msra.mxu0 %v60
    %307 = vmatpush.msra.mxu0 %v59
    %308 = vmatpush.msra.mxu0 %v58
    %309 = vmatpush.msra.mxu0 %v57
    %310 = vmatpush.msra.mxu0 %v56
    %311 = vmatmul.f32.gmra.mxu0 %v293
    %v312 = vpop.f32.mrf.mxu0
    %v313 = vadd.f32 0.0, %v312
    %314 = vdwg.mxu0
    %v316 = vrot.slane %v313, 3
    %v318 = vadd.f32 %v86, %v316
    %v319 = vtanh.pop %v318
    %v320 = vmul.f32 %v319, 0.5
    %v321 = vadd.f32 %v320, 0.5
    %v322 = vsel %vm91, %v319, %v321
    %324 = vrot.lane.b32.xlu0 %v322, 32
    %v325 = vpop.permute.xlu0 %324
    %v327 = vmul.f32 %v322, %v325
    %329 = vrot.lane.b32.xlu0 %v327, 64
    %v330 = vpop.permute.xlu0 %329
    %v333 = vrot.slane %v289, 7
    %v335 = vmul.f32 %v322, %v333
    %v336 = vadd.f32 %v330, %v335
    %v337 = vtanh.pop %v336
    %v338 = vmul.f32 %v325, %v337
    %v340 = vrot.slane %v338, 5
    %342 = vmatpush.msra.mxu0 %v71
    %343 = vmatpush.msra.mxu0 %v70
    %344 = vmatpush.msra.mxu0 %v69
    %345 = vmatpush.msra.mxu0 %v68
    %346 = vmatpush.msra.mxu0 %v67
    %347 = vmatpush.msra.mxu0 %v66
    %348 = vmatpush.msra.mxu0 %v65
    %349 = vmatpush.msra.mxu0 %v64
    %350 = vmatpush.msra.mxu0 %v63
    %351 = vmatpush.msra.mxu0 %v62
    %352 = vmatpush.msra.mxu0 %v61
    %353 = vmatpush.msra.mxu0 %v60
    %354 = vmatpush.msra.mxu0 %v59
    %355 = vmatpush.msra.mxu0 %v58
    %356 = vmatpush.msra.mxu0 %v57
    %357 = vmatpush.msra.mxu0 %v56
    %358 = vmatmul.f32.gmra.mxu0 %v340
    %v359 = vpop.f32.mrf.mxu0
    %v360 = vadd.f32 0.0, %v359
    %361 = vdwg.mxu0
    %v363 = vrot.slane %v360, 2
    %v365 = vadd.f32 %v86, %v363
    %v366 = vtanh.pop %v365
    %v367 = vmul.f32 %v366, 0.5
    %v368 = vadd.f32 %v367, 0.5
    %v369 = vsel %vm91, %v366, %v368
    %371 = vrot.lane.b32.xlu0 %v369, 32
    %v372 = vpop.permute.xlu0 %371
    %v374 = vmul.f32 %v369, %v372
    %376 = vrot.lane.b32.xlu0 %v374, 64
    %v377 = vpop.permute.xlu0 %376
    %v380 = vrot.slane %v336, 7
    %v382 = vmul.f32 %v369, %v380
    %v383 = vadd.f32 %v377, %v382
    %v384 = vtanh.pop %v383
    %v385 = vmul.f32 %v372, %v384
    %v387 = vrot.slane %v385, 6
    %389 = vmatpush.msra.mxu0 %v71
    %390 = vmatpush.msra.mxu0 %v70
    %391 = vmatpush.msra.mxu0 %v69
    %392 = vmatpush.msra.mxu0 %v68
    %393 = vmatpush.msra.mxu0 %v67
    %394 = vmatpush.msra.mxu0 %v66
    %395 = vmatpush.msra.mxu0 %v65
    %396 = vmatpush.msra.mxu0 %v64
    %397 = vmatpush.msra.mxu0 %v63
    %398 = vmatpush.msra.mxu0 %v62
    %399 = vmatpush.msra.mxu0 %v61
    %400 = vmatpush.msra.mxu0 %v60
    %401 = vmatpush.msra.mxu0 %v59
    %402 = vmatpush.msra.mxu0 %v58
    %403 = vmatpush.msra.mxu0 %v57
    %404 = vmatpush.msra.mxu0 %v56
    %405 = vmatmul.f32.gmra.mxu0 %v387
    %v406 = vpop.f32.mrf.mxu0
    %v407 = vadd.f32 0.0, %v406
    %408 = vdwg.mxu0
    %v410 = vrot.slane %v407, 1
    %v412 = vadd.f32 %v86, %v410
    %v413 = vtanh.pop %v412
    %v414 = vmul.f32 %v413, 0.5
    %v415 = vadd.f32 %v414, 0.5
    %v416 = vsel %vm91, %v413, %v415
    %418 = vrot.lane.b32.xlu0 %v416, 32
    %v419 = vpop.permute.xlu0 %418
    %v421 = vmul.f32 %v416, %v419
    %423 = vrot.lane.b32.xlu0 %v421, 64
    %v424 = vpop.permute.xlu0 %423
    %v427 = vrot.slane %v383, 7
    %v429 = vmul.f32 %v416, %v427
    %v430 = vadd.f32 %v424, %v429
    %v431 = vtanh.pop %v430
    %v432 = vmul.f32 %v419, %v431
    %v433 = vld [vmem:[#allocation4] sm:$0xff]
    %v434 = vld [vmem:[#allocation4 + $0x8] sm:$0xff]
    %v435 = vld [vmem:[#allocation4 + $0x10] sm:$0xff]
    %v436 = vld [vmem:[#allocation4 + $0x18] sm:$0xff]
    %v437 = vld [vmem:[#allocation4 + $0x20] sm:$0xff]
    %v438 = vld [vmem:[#allocation4 + $0x28] sm:$0xff]
    %v439 = vld [vmem:[#allocation4 + $0x30] sm:$0xff]
    %v440 = vld [vmem:[#allocation4 + $0x38] sm:$0xff]
    %v441 = vld [vmem:[#allocation4 + $0x40] sm:$0xff]
    %v442 = vld [vmem:[#allocation4 + $0x48] sm:$0xff]
    %v443 = vld [vmem:[#allocation4 + $0x50] sm:$0xff]
    %v444 = vld [vmem:[#allocation4 + $0x58] sm:$0xff]
    %v445 = vld [vmem:[#allocation4 + $0x60] sm:$0xff]
    %v446 = vld [vmem:[#allocation4 + $0x68] sm:$0xff]
    %v447 = vld [vmem:[#allocation4 + $0x70] sm:$0xff]
    %v448 = vld [vmem:[#allocation4 + $0x78] sm:$0xff]
    %v449 = vld [vmem:[%s5] sm:$0x1]
    %v451 = vrot.slane %v432, 7
    %453 = vmatpush.msra.mxu0 %v448
    %454 = vmatpush.msra.mxu0 %v447
    %455 = vmatpush.msra.mxu0 %v446
    %456 = vmatpush.msra.mxu0 %v445
    %457 = vmatpush.msra.mxu0 %v444
    %458 = vmatpush.msra.mxu0 %v443
    %459 = vmatpush.msra.mxu0 %v442
    %460 = vmatpush.msra.mxu0 %v441
    %461 = vmatpush.msra.mxu0 %v440
    %462 = vmatpush.msra.mxu0 %v439
    %463 = vmatpush.msra.mxu0 %v438
    %464 = vmatpush.msra.mxu0 %v437
    %465 = vmatpush.msra.mxu0 %v436
    %466 = vmatpush.msra.mxu0 %v435
    %467 = vmatpush.msra.mxu0 %v434
    %468 = vmatpush.msra.mxu0 %v433
    %469 = vmatmul.f32.gmra.mxu0 %v451
    %v470 = vpop.f32.mrf.mxu0
    %v471 = vadd.f32 %v449, %v470
    %472 = vdwg.mxu0
    %v473 = vrot.slane %v432, 6
    %v476 = vrot.slane %v430, 5
    %vm478 = vcmask 1040384
    %v479 = vsel %vm478, %v471, %v473
    %vm480 = vcmask 1041408
    %v481 = vsel %vm480, %v479, %v476
    %482 = vst [vmem:[%s6] sm:$0x7] %v481
    // Predicated region
    $region34: #{lstm_forward.1} parent=1 // pred_check
      _
    $region35: #{lstm_forward.1} parent=1 // pred_check_branch
      %484 = sbr.rel (0) target = $region37
    $region36: #{lstm_forward.1} parent=1 // pred_region
      _
    $region37: #{lstm_forward.1} parent=1 // pred_fallthru
      _
    // Predicated region
    $region38: #{lstm_forward.1} parent=1 // pred_check
      _
    $region39: #{lstm_forward.1} parent=1 // pred_check_branch
      %486 = sbr.rel (0) target = $region41
    $region40: #{lstm_forward.1} parent=1 // pred_region
      _
    $region41: #{lstm_forward.1} parent=1 // pred_fallthru
      _
    %487 = vsyncpa [#allocation3], 1
    %488 = vsyncpa [#allocation5], 1

</llo_original>
